<compile_context>
chip_gen: v7x
topology: tpu7x:2x2x1
jax: 0.10.0
libtpu: 0.0.40
codegen_flags: <defaults>
</compile_context>

<pallas_src>
import functools

import jax
import jax.numpy as jnp
from jax.experimental import pallas as pl
from jax.experimental.pallas import tpu as pltpu


def _round_up(x, m):
    return (x + m - 1) // m * m


def _hard_bootstrapping_kernel(y_ref, lab_ref, out_ref, *, beta):
    # y_ref:   (TM, C_pad) logits tile (padded class lanes hold a huge negative value)
    # lab_ref: (TM, 1) int32 target labels
    # out_ref: (TM, 1) float32 per-sample loss
    logits = y_ref[...].astype(jnp.float32)                       # (tm, cp)
    tm, cp = logits.shape

    # Row-wise softmax statistics (computed once per row block).
    row_max = jnp.max(logits, axis=1, keepdims=True)              # (tm, 1)
    lse = row_max + jnp.log(
        jnp.sum(jnp.exp(logits - row_max), axis=1, keepdims=True))  # (tm, 1)

    # Gather logit at the target label via a single iota==label select.
    lab = lab_ref[...]                                            # (tm, 1) int32
    class_idx = jax.lax.broadcasted_iota(jnp.int32, (tm, cp), 1)  # (tm, cp)
    tgt = jnp.sum(jnp.where(class_idx == lab, logits, 0.0),
                  axis=1, keepdims=True)                          # (tm, 1)

    # cross_entropy      = lse - tgt      (= -log_softmax at the target)
    # bootstrap term     = lse - row_max  (= -log_softmax at the argmax; sqrt-free, gather-free)
    per = jnp.float32(beta) * (lse - tgt) + jnp.float32(1.0 - beta) * (lse - row_max)
    out_ref[...] = per.astype(out_ref.dtype)


def hard_bootstrapping_loss(y_pred, y, beta=0.8, reduce=True, block_rows=None):
    """y_pred: [n, c] float logits; y: [n] int labels. Matches HardBootstrappingLoss.forward."""
    n, c = y_pred.shape

    # --- pad to TPU-friendly shapes (lanes multiple of 128, sublanes multiple of 8) ---
    c_pad = max(128, _round_up(c, 128))
    n8 = _round_up(n, 8)
    if block_rows is None:
        # ~1 MiB of f32 logits per block (double-buffered by the pipeline), >= 8 rows.
        block_rows = max(8, min(256, ((1 << 20) // (4 * c_pad)) // 8 * 8))
    block_rows = _round_up(block_rows, 8)
    tm = min(block_rows, n8)
    n_pad = _round_up(n, tm)
    grid_rows = n_pad // tm

    neg_fill = float(jnp.finfo(y_pred.dtype).min)  # kills padded class lanes in max / exp
    yp = y_pred
    if c_pad != c:
        yp = jnp.pad(yp, ((0, 0), (0, c_pad - c)), constant_values=neg_fill)
    if n_pad != n:
        yp = jnp.pad(yp, ((0, n_pad - n), (0, 0)))
    lab = jnp.pad(y.astype(jnp.int32), (0, n_pad - n)).reshape(n_pad, 1)

    kernel = functools.partial(_hard_bootstrapping_kernel, beta=float(beta))
    per_sample = pl.pallas_call(
        kernel,
        out_shape=jax.ShapeDtypeStruct((n_pad, 1), jnp.float32),
        grid_spec=pltpu.PrefetchScalarGridSpec(
            num_scalar_prefetch=0,
            grid=(grid_rows,),
            in_specs=[
                pl.BlockSpec((tm, c_pad), lambda i: (i, 0)),
                pl.BlockSpec((tm, 1), lambda i: (i, 0)),
            ],
            out_specs=pl.BlockSpec((tm, 1), lambda i: (i, 0)),
        ),
        compiler_params=pltpu.CompilerParams(
            dimension_semantics=("parallel",)),   # row blocks are independent -> 2 TCs on v7x
    )(yp, lab)

    per_sample = per_sample[:n, 0]                # drop padded rows
    if reduce:
        return jnp.mean(per_sample)
    return per_sample


if __name__ == "__main__":
    key = jax.random.PRNGKey(0)
    n, c = 16, 10
    beta = 0.8
    k1, k2 = jax.random.split(key)
    y_pred = jax.random.normal(k1, (n, c), dtype=jnp.float32)
    y = jax.random.randint(k2, (n,), 0, c, dtype=jnp.int32)

    loss = hard_bootstrapping_loss(y_pred, y, beta=beta, reduce=True)
    jax.block_until_ready(loss)

    # Pure-JAX reference (same math as the PyTorch forward).
    logp = jax.nn.log_softmax(y_pred.astype(jnp.float32), axis=1)
    ce = -jnp.take_along_axis(logp, y[:, None], axis=1)[:, 0]
    z = jnp.argmax(jax.nn.softmax(y_pred, axis=1), axis=1)
    boot = -jnp.take_along_axis(logp, z[:, None], axis=1)[:, 0]
    ref_per = beta * ce + (1.0 - beta) * boot
    ref_mean = jnp.mean(ref_per)
    assert jnp.allclose(loss, ref_mean, atol=1e-5, rtol=1e-5), (loss, ref_mean)

    # reduce=False path, and a multi-block grid (block_rows=8 -> 2 grid steps).
    per = hard_bootstrapping_loss(y_pred, y, beta=beta, reduce=False, block_rows=8)
    jax.block_until_ready(per)
    assert jnp.allclose(per, ref_per, atol=1e-5, rtol=1e-5), (per, ref_per)

    print("KERNEL_OK")
</pallas_src>

<mosaic_0001>
module attributes {stable_mosaic.version = 11 : i64} {
  func.func @_hard_bootstrapping_kernel(%arg0: i32, %arg1: memref<16x128xf32, #tpu.memory_space<vmem>>, %arg2: memref<16x1xi32, #tpu.memory_space<vmem>>, %arg3: memref<16x1xf32, #tpu.memory_space<vmem>>) attributes {dimension_semantics = [#tpu.dimension_semantics<parallel>], iteration_bounds = array<i64: 1>, scalar_prefetch = 0 : i64, scratch_operands = 0 : i64, tpu.core_type = #tpu.core_type<tc>, window_params = [{transform_indices = @transform_0, window_bounds = array<i64: 16, 128>}, {transform_indices = @transform_1, window_bounds = array<i64: 16, 1>}, {transform_indices = @transform_2, window_bounds = array<i64: 16, 1>}]} {
    %c0 = arith.constant 0 : index
    %c0_0 = arith.constant 0 : index
    %0 = vector.load %arg1[%c0, %c0_0] : memref<16x128xf32, #tpu.memory_space<vmem>>, vector<16x128xf32>
    %cst = arith.constant dense<0xFF800000> : vector<16xf32>
    %1 = vector.multi_reduction <maximumf>, %0, %cst [1] : vector<16x128xf32> to vector<16xf32>
    %2 = vector.shape_cast %1 : vector<16xf32> to vector<16x1xf32>
    %3 = vector.broadcast %2 : vector<16x1xf32> to vector<16x128xf32>
    %4 = arith.subf %0, %3 : vector<16x128xf32>
    %5 = math.exp %4 : vector<16x128xf32>
    %cst_1 = arith.constant dense<0.000000e+00> : vector<16xf32>
    %6 = vector.multi_reduction <add>, %5, %cst_1 [1] : vector<16x128xf32> to vector<16xf32>
    %7 = vector.shape_cast %6 : vector<16xf32> to vector<16x1xf32>
    %8 = math.log %7 : vector<16x1xf32>
    %9 = arith.addf %2, %8 : vector<16x1xf32>
    %c0_2 = arith.constant 0 : index
    %c0_3 = arith.constant 0 : index
    %10 = vector.load %arg2[%c0_2, %c0_3] : memref<16x1xi32, #tpu.memory_space<vmem>>, vector<16x1xi32>
    %11 = tpu.iota {dimensions = array<i32: 1>} : vector<16x128xi32>
    %12 = vector.broadcast %10 : vector<16x1xi32> to vector<16x128xi32>
    %13 = arith.cmpi eq, %11, %12 : vector<16x128xi32>
    %cst_4 = arith.constant 0.000000e+00 : f32
    %14 = vector.broadcast %cst_4 : f32 to vector<16x128xf32>
    %15 = arith.select %13, %0, %14 : vector<16x128xi1>, vector<16x128xf32>
    %cst_5 = arith.constant dense<0.000000e+00> : vector<16xf32>
    %16 = vector.multi_reduction <add>, %15, %cst_5 [1] : vector<16x128xf32> to vector<16xf32>
    %17 = vector.shape_cast %16 : vector<16xf32> to vector<16x1xf32>
    %18 = arith.subf %9, %17 : vector<16x1xf32>
    %cst_6 = arith.constant 8.000000e-01 : f32
    %19 = vector.broadcast %cst_6 : f32 to vector<16x1xf32>
    %20 = arith.mulf %19, %18 : vector<16x1xf32>
    %21 = arith.subf %9, %2 : vector<16x1xf32>
    %cst_7 = arith.constant 2.000000e-01 : f32
    %22 = vector.broadcast %cst_7 : f32 to vector<16x1xf32>
    %23 = arith.mulf %22, %21 : vector<16x1xf32>
    %24 = arith.addf %20, %23 : vector<16x1xf32>
    %c0_8 = arith.constant 0 : index
    %c0_9 = arith.constant 0 : index
    %25 = vector.load %arg3[%c0_8, %c0_9] : memref<16x1xf32, #tpu.memory_space<vmem>>, vector<16x1xf32>
    tpu.vector_store %arg3[%c0_8, %c0_9], %24 {strides = array<i32>} : memref<16x1xf32, #tpu.memory_space<vmem>>, vector<16x1xf32>,
    return
  }
  func.func @transform_0(%arg0: i32) -> (i32, i32) {
    %c0_i32 = arith.constant 0 : i32
    %c0_i32_0 = arith.constant 0 : i32
    return %arg0, %c0_i32 : i32, i32
  }
  func.func @transform_1(%arg0: i32) -> (i32, i32) {
    %c0_i32 = arith.constant 0 : i32
    %c0_i32_0 = arith.constant 0 : i32
    return %arg0, %c0_i32 : i32, i32
  }
  func.func @transform_2(%arg0: i32) -> (i32, i32) {
    %c0_i32 = arith.constant 0 : i32
    %c0_i32_0 = arith.constant 0 : i32
    return %arg0, %c0_i32 : i32, i32
  }
}

</mosaic_0001>

<llo_original>
// kernel: tpu_custom_call.1
$region0: #{tpu_custom_call.1}
  #allocation0 [shape = 'u32[]', space=smem, size = 0x4, offset = 0x4, fixed_abs, tag = 'smem constant byte address 0x4 - core index']
  #allocation1 [shape = 'u32[144,128]{1,0:T(1,128)}', space=vmem, size = 0x12000, scoped, tag = 'internal scratch']
  %s0 = inlined_call_operand.vmem [shape: f32[16,128], index: 0, kind: input, shape index: {}]
  %s1 = inlined_call_operand.vmem [shape: s32[16,1], index: 1, kind: input, shape index: {}]
  %s2 = inlined_call_operand.vmem [shape: f32[16,1], index: 2, kind: output, shape index: {}]
  %s3 = sld [smem:[#allocation0]]
  $region18: #{tpu_custom_call.1} parent=0
    _
  %s5 = ssub.s32 1, %s3
  %s6 = scalar_select 0, %s5, %s3
  // Predicated region
  $region2: #{tpu_custom_call.1} parent=0 // pred_check
    _
  $region3: #{tpu_custom_call.1} parent=0 // pred_check_branch
    %8 = sbr.rel (0) target = $region5
  $region4: #{tpu_custom_call.1} parent=0 // pred_region
    _
  $region5: #{tpu_custom_call.1} parent=0 // pred_fallthru
    _
  // Predicated region
  $region6: #{tpu_custom_call.1} parent=0 // pred_check
    _
  $region7: #{tpu_custom_call.1} parent=0 // pred_check_branch
    %10 = sbr.rel (0) target = $region9
  $region8: #{tpu_custom_call.1} parent=0 // pred_region
    _
  $region9: #{tpu_custom_call.1} parent=0 // pred_fallthru
    _
  %v11 = vld [vmem:[%s0] sm:$0xff]
  %v12 = vld [vmem:[%s0 + $0x8] sm:$0xff]
  %13 = vmax.xlane.f32.xlu0 %v11
  %v14 = vpop.xlane.xlu0 %13
  %15 = vmax.xlane.f32.xlu0 %v12
  %v16 = vpop.xlane.xlu0 %15
  %v17 = vsub.f32 %v11, %v14
  %v18 = vsub.f32 %v12, %v16
  %v19 = vmul.f32 %v17, 1.442695
  %v20 = vpow.pop %v19
  %v21 = vmul.f32 %v18, 1.442695
  %v22 = vpow.pop %v21
  %23 = vadd.xlane.f32.xlu0 %v20
  %v24 = vpop.xlane.xlu0 %23
  %25 = vadd.xlane.f32.xlu0 %v22
  %v26 = vpop.xlane.xlu0 %25
  %v27 = vlog2.pop %v24
  %v28 = vmul.f32 %v27, 0.6931472
  %v29 = vlog2.pop %v26
  %v30 = vmul.f32 %v29, 0.6931472
  %v31 = vadd.f32 %v14, %v28
  %v32 = vadd.f32 %v16, %v30
  %v33 = vld [vmem:[%s1] sm:$0xff]
  %v34 = vld [vmem:[%s1 + $0x8] sm:$0xff]
  %v35 = vlaneseq
  %v36 = vand.u32 %v35, 127
  %37 = vset.pattern.permute.xlu0 0
  %38 = vperm.xlu0 %37, %v33
  %v39 = vpop.permute.xlu0 %38
  %40 = vset.pattern.permute.xlu0 0
  %41 = vperm.xlu0 %40, %v34
  %v42 = vpop.permute.xlu0 %41
  %vm43 = vcmp.eq.s32.totalorder %v36, %v39
  %vm44 = vcmp.eq.s32.totalorder %v36, %v42
  %v45 = vsel %vm43, %v11, 0.0
  %v46 = vsel %vm44, %v12, 0.0
  %47 = vadd.xlane.f32.xlu0 %v45
  %v48 = vpop.xlane.xlu0 %47
  %49 = vadd.xlane.f32.xlu0 %v46
  %v50 = vpop.xlane.xlu0 %49
  %v51 = vsub.f32 %v31, %v48
  %v52 = vsub.f32 %v32, %v50
  %v53 = vmul.f32 %v51, 0.8
  %v54 = vmul.f32 %v52, 0.8
  %v55 = vsub.f32 %v31, %v14
  %v56 = vsub.f32 %v32, %v16
  %v57 = vmul.f32 %v55, 0.2
  %v58 = vmul.f32 %v56, 0.2
  %v59 = vadd.f32 %v53, %v57
  %v60 = vadd.f32 %v54, %v58
  %vm61 = vcmask 7168
  %62 = vst.msk [vmem:[%s2] sm:$0xff] %vm61, %v59
  %63 = vst.msk [vmem:[%s2 + $0x8] sm:$0xff] %vm61, %v60
  // Predicated region
  $region10: #{tpu_custom_call.1} parent=0 // pred_check
    _
  $region11: #{tpu_custom_call.1} parent=0 // pred_check_branch
    %65 = sbr.rel (0) target = $region13
  $region12: #{tpu_custom_call.1} parent=0 // pred_region
    _
  $region13: #{tpu_custom_call.1} parent=0 // pred_fallthru
    _
  // Predicated region
  $region14: #{tpu_custom_call.1} parent=0 // pred_check
    _
  $region15: #{tpu_custom_call.1} parent=0 // pred_check_branch
    %67 = sbr.rel (0) target = $region17
  $region16: #{tpu_custom_call.1} parent=0 // pred_region
    _
  $region17: #{tpu_custom_call.1} parent=0 // pred_fallthru
    _

</llo_original>
